<compile_context>
chip_gen: v7x
topology: tpu7x:2x2x1
jax: 0.10.0
libtpu: 0.0.40
codegen_flags: <defaults>
</compile_context>

<pallas_src>
import jax
import jax.numpy as jnp
from jax.experimental import pallas as pl
from jax.experimental.pallas import tpu as pltpu


def _round_up(x, m):
    return ((x + m - 1) // m) * m


# ----------------------------------------------------------------------------
# Pallas kernel: fused 3-layer MLP. All matmuls go to the MXU with f32
# accumulation; ReLU / bias adds are VPU elementwise on full (tile_b, H) tiles.
# ----------------------------------------------------------------------------
def critic_kernel(s_ref, a_ref, w1s_ref, w1a_ref, b1_ref, w2_ref, b2_ref,
                  w3_ref, b3_ref, q_ref):
    cd = w2_ref.dtype  # compute dtype chosen at weight-prep time (f32 or bf16)

    # Layer 1: fused "concat" via two matmuls (no cat materialized in HBM).
    h = jnp.dot(s_ref[...].astype(cd), w1s_ref[...],
                preferred_element_type=jnp.float32)
    h = h + jnp.dot(a_ref[...].astype(cd), w1a_ref[...],
                    preferred_element_type=jnp.float32)
    h = jnp.maximum(h + b1_ref[...], 0.0)                      # (tile_b, H) f32

    # Layer 2.
    h = jnp.dot(h.astype(cd), w2_ref[...],
                preferred_element_type=jnp.float32) + b2_ref[...]
    h = jnp.maximum(h, 0.0)                                    # (tile_b, H) f32

    # Layer 3 (out_features == 1): single MXU contraction, N=1.
    q = jnp.dot(h.astype(cd), w3_ref[...],
                preferred_element_type=jnp.float32)            # (tile_b, 1)
    q_ref[...] = (q + b3_ref[0, 0]).astype(q_ref.dtype)


# ----------------------------------------------------------------------------
# One-time weight preparation (do NOT call per forward).
# ----------------------------------------------------------------------------
def prepare_critic_params(params, state_dim, action_dim, *,
                          compute_dtype=jnp.float32):
    """Split fc1 into state/action halves, pad hidden dims to 128 lanes,
    store weights [in, out], biases f32. Padding is an exact no-op through relu."""
    w1, b1, w2, b2, w3, b3 = params
    d_in, h1 = w1.shape
    h2 = w2.shape[1]
    assert d_in == state_dim + action_dim
    H = _round_up(max(h1, h2, 1), 128)
    cd = compute_dtype
    return {
        "w1s": jnp.pad(w1[:state_dim], ((0, 0), (0, H - h1))).astype(cd),
        "w1a": jnp.pad(w1[state_dim:], ((0, 0), (0, H - h1))).astype(cd),
        "b1": jnp.pad(b1, ((0, 0), (0, H - h1))).astype(jnp.float32),
        "w2": jnp.pad(w2, ((0, H - h1), (0, H - h2))).astype(cd),
        "b2": jnp.pad(b2, ((0, 0), (0, H - h2))).astype(jnp.float32),
        "w3": jnp.pad(w3, ((0, H - h2), (0, 0))).astype(cd),      # (H, 1) column
        "b3": b3.reshape(1, 1).astype(jnp.float32),               # SMEM scalar
    }


def _choose_tiling(batch, tile_cap):
    """128-aligned batch padding; one big tile if it fits, else an even number
    of equal 128-aligned tiles (balanced across v7x's two TensorCores)."""
    b_pad = _round_up(batch, 128)
    if b_pad <= tile_cap:
        return b_pad, b_pad, 1
    num_tiles = pl.cdiv(b_pad, tile_cap)
    if num_tiles % 2:
        num_tiles += 1
    tile_b = _round_up(pl.cdiv(b_pad, num_tiles), 128)
    return tile_b, tile_b * num_tiles, num_tiles


# ----------------------------------------------------------------------------
# Forward pass.
# ----------------------------------------------------------------------------
def critic_forward(state, action, prep, *, tile_cap=4096):
    """state: [B, state_dim] f32, action: [B, action_dim] f32,
    prep: output of prepare_critic_params. Returns q: [B, 1] f32."""
    B, state_dim = state.shape
    action_dim = action.shape[1]
    H = prep["w2"].shape[0]

    tile_b, b_pad, num_tiles = _choose_tiling(B, tile_cap)
    if b_pad != B:
        state = jnp.pad(state, ((0, b_pad - B), (0, 0)))
        action = jnp.pad(action, ((0, b_pad - B), (0, 0)))

    # Explicit VMEM budget: double-buffered inputs + resident weights +
    # f32 intermediates + double-buffered (tile_b, 1) output, with headroom.
    wsize = jnp.dtype(prep["w2"].dtype).itemsize
    act_b = 2 * 4 * tile_b * (state_dim + action_dim)
    w_b = 2 * (wsize * H * (state_dim + action_dim + H + 1) + 4 * (2 * H + 1))
    inter = 4 * 3 * tile_b * H
    out_b = 2 * 4 * tile_b
    vmem_limit = int(min(max(2 * (act_b + w_b + inter + out_b), 16 << 20)
                         + (2 << 20), 64 << 20))

    q = pl.pallas_call(
        critic_kernel,
        out_shape=jax.ShapeDtypeStruct((b_pad, 1), jnp.float32),
        grid_spec=pltpu.PrefetchScalarGridSpec(
            num_scalar_prefetch=0,
            grid=(num_tiles,),
            in_specs=[
                # activations: tiled over batch (full feature dims)
                pl.BlockSpec((tile_b, state_dim), lambda i: (i, 0)),
                pl.BlockSpec((tile_b, action_dim), lambda i: (i, 0)),
                # weights / biases: full blocks, resident across grid steps
                pl.BlockSpec((state_dim, H), lambda i: (0, 0)),
                pl.BlockSpec((action_dim, H), lambda i: (0, 0)),
                pl.BlockSpec((1, H), lambda i: (0, 0)),
                pl.BlockSpec((H, H), lambda i: (0, 0)),
                pl.BlockSpec((1, H), lambda i: (0, 0)),
                pl.BlockSpec((H, 1), lambda i: (0, 0)),
                # final bias as an SMEM scalar (no padded (8,128) VMEM tile)
                pl.BlockSpec(memory_space=pltpu.MemorySpace.SMEM),
            ],
            out_specs=pl.BlockSpec((tile_b, 1), lambda i: (i, 0)),
        ),
        compiler_params=pltpu.CompilerParams(
            dimension_semantics=("parallel",),
            vmem_limit_bytes=vmem_limit),
    )(state, action, prep["w1s"], prep["w1a"], prep["b1"], prep["w2"],
      prep["b2"], prep["w3"], prep["b3"])

    return q[:B]


# ----------------------------------------------------------------------------
# Deterministic parameter init (orthogonal weights like torch.nn.init.orthogonal_,
# uniform biases like nn.Linear default).
# ----------------------------------------------------------------------------
def orthogonal_init(key, out_dim, in_dim):
    rows, cols = out_dim, in_dim
    n, m = max(rows, cols), min(rows, cols)
    a = jax.random.normal(key, (n, m), dtype=jnp.float32)
    q, r = jnp.linalg.qr(a)
    d = jnp.diag(r)
    q = q * jnp.where(d == 0, 1.0, jnp.sign(d))                  # deterministic sign
    if rows < cols:
        q = q.T
    return q[:rows, :cols]                                       # [out, in]


def init_critic_params(key, state_dim, action_dim, hidden_dim=(30, 30)):
    d_in = state_dim + action_dim
    k1, k2, k3, kb1, kb2, kb3 = jax.random.split(key, 6)

    def linear(kw, kb, fan_in, fan_out):
        w = orthogonal_init(kw, fan_out, fan_in)                 # [out, in] torch layout
        bound = 1.0 / jnp.sqrt(jnp.float32(fan_in))
        b = jax.random.uniform(kb, (1, fan_out), jnp.float32, -bound, bound)
        return w.T, b                                            # store as [in, out]

    w1, b1 = linear(k1, kb1, d_in, hidden_dim[0])
    w2, b2 = linear(k2, kb2, hidden_dim[0], hidden_dim[1])
    w3, b3 = linear(k3, kb3, hidden_dim[1], 1)
    return (w1, b1, w2, b2, w3, b3)


def critic_ref(state, action, params):
    """Pure-JAX reference for correctness checking."""
    w1, b1, w2, b2, w3, b3 = params
    x = jnp.concatenate([state, action], axis=-1)
    x = jnp.maximum(x @ w1 + b1, 0.0)
    x = jnp.maximum(x @ w2 + b2, 0.0)
    return x @ w3 + b3


if __name__ == "__main__":
    state_dim, action_dim = 12, 4
    batch = 8

    key = jax.random.PRNGKey(0)
    k_param, k_state, k_action = jax.random.split(key, 3)

    params = init_critic_params(k_param, state_dim, action_dim)
    state = jax.random.normal(k_state, (batch, state_dim), dtype=jnp.float32)
    action = jax.random.normal(k_action, (batch, action_dim), dtype=jnp.float32)

    q_ref = critic_ref(state, action, params)

    fwd = jax.jit(critic_forward)

    # f32 path: exact (up to f32 rounding) match against the reference.
    prep_f32 = prepare_critic_params(params, state_dim, action_dim)
    q = fwd(state, action, prep_f32)
    jax.block_until_ready(q)
    assert q.shape == (batch, 1), q.shape
    assert jnp.allclose(q, q_ref, atol=1e-4, rtol=1e-4), (q, q_ref)

    # bf16-weight path (MXU-native operands, f32 accumulation): looser tolerance.
    prep_bf16 = prepare_critic_params(params, state_dim, action_dim,
                                      compute_dtype=jnp.bfloat16)
    q_bf16 = fwd(state, action, prep_bf16)
    jax.block_until_ready(q_bf16)
    assert jnp.allclose(q_bf16, q_ref, atol=7.5e-2, rtol=7.5e-2), (q_bf16, q_ref)

    print("KERNEL_OK")
</pallas_src>

<mosaic_0001>
module attributes {stable_mosaic.version = 11 : i64} {
  func.func @critic_kernel(%arg0: i32, %arg1: memref<128x12xf32, #tpu.memory_space<vmem>>, %arg2: memref<128x4xf32, #tpu.memory_space<vmem>>, %arg3: memref<12x128xf32, #tpu.memory_space<vmem>>, %arg4: memref<4x128xf32, #tpu.memory_space<vmem>>, %arg5: memref<1x128xf32, #tpu.memory_space<vmem>>, %arg6: memref<128x128xf32, #tpu.memory_space<vmem>>, %arg7: memref<1x128xf32, #tpu.memory_space<vmem>>, %arg8: memref<128x1xf32, #tpu.memory_space<vmem>>, %arg9: memref<1x1xf32, #tpu.memory_space<smem>>, %arg10: memref<128x1xf32, #tpu.memory_space<vmem>>) attributes {dimension_semantics = [#tpu.dimension_semantics<parallel>], iteration_bounds = array<i64: 1>, scalar_prefetch = 0 : i64, scratch_operands = 0 : i64, tpu.core_type = #tpu.core_type<tc>, window_params = [{transform_indices = @transform_0, window_bounds = array<i64: 128, 12>}, {transform_indices = @transform_1, window_bounds = array<i64: 128, 4>}, {pipeline_mode = #tpu.pipeline_mode<synchronous>, transform_indices = @transform_2, window_bounds = array<i64: 12, 128>}, {pipeline_mode = #tpu.pipeline_mode<synchronous>, transform_indices = @transform_3, window_bounds = array<i64: 4, 128>}, {pipeline_mode = #tpu.pipeline_mode<synchronous>, transform_indices = @transform_4, window_bounds = array<i64: 1, 128>}, {pipeline_mode = #tpu.pipeline_mode<synchronous>, transform_indices = @transform_5, window_bounds = array<i64: 128, 128>}, {pipeline_mode = #tpu.pipeline_mode<synchronous>, transform_indices = @transform_6, window_bounds = array<i64: 1, 128>}, {pipeline_mode = #tpu.pipeline_mode<synchronous>, transform_indices = @transform_7, window_bounds = array<i64: 128, 1>}, {transform_indices = @transform_8, window_bounds = array<i64: 1, 1>}, {transform_indices = @transform_9, window_bounds = array<i64: 128, 1>}]} {
    %c0 = arith.constant 0 : index
    %c0_0 = arith.constant 0 : index
    %0 = vector.load %arg1[%c0, %c0_0] : memref<128x12xf32, #tpu.memory_space<vmem>>, vector<128x12xf32>
    %c0_1 = arith.constant 0 : index
    %c0_2 = arith.constant 0 : index
    %1 = vector.load %arg3[%c0_1, %c0_2] : memref<12x128xf32, #tpu.memory_space<vmem>>, vector<12x128xf32>
    %cst = arith.constant dense<0.000000e+00> : vector<128x128xf32>
    %2 = tpu.matmul %0, %1, %cst {dimension_numbers = #tpu.dot_dimension_numbers<[1], [0], [0], [1], [0, 0, 1, 1], [], []>} : vector<128x12xf32>, vector<12x128xf32>, vector<128x128xf32> -> vector<128x128xf32>
    %c0_3 = arith.constant 0 : index
    %c0_4 = arith.constant 0 : index
    %3 = vector.load %arg2[%c0_3, %c0_4] : memref<128x4xf32, #tpu.memory_space<vmem>>, vector<128x4xf32>
    %c0_5 = arith.constant 0 : index
    %c0_6 = arith.constant 0 : index
    %4 = vector.load %arg4[%c0_5, %c0_6] : memref<4x128xf32, #tpu.memory_space<vmem>>, vector<4x128xf32>
    %cst_7 = arith.constant dense<0.000000e+00> : vector<128x128xf32>
    %5 = tpu.matmul %3, %4, %cst_7 {dimension_numbers = #tpu.dot_dimension_numbers<[1], [0], [0], [1], [0, 0, 1, 1], [], []>} : vector<128x4xf32>, vector<4x128xf32>, vector<128x128xf32> -> vector<128x128xf32>
    %6 = arith.addf %2, %5 : vector<128x128xf32>
    %c0_8 = arith.constant 0 : index
    %c0_9 = arith.constant 0 : index
    %7 = vector.load %arg5[%c0_8, %c0_9] : memref<1x128xf32, #tpu.memory_space<vmem>>, vector<1x128xf32>
    %8 = vector.broadcast %7 : vector<1x128xf32> to vector<128x128xf32>
    %9 = arith.addf %6, %8 : vector<128x128xf32>
    %cst_10 = arith.constant 0.000000e+00 : f32
    %10 = vector.broadcast %cst_10 : f32 to vector<128x128xf32>
    %11 = arith.maximumf %9, %10 : vector<128x128xf32>
    %c0_11 = arith.constant 0 : index
    %c0_12 = arith.constant 0 : index
    %12 = vector.load %arg6[%c0_11, %c0_12] : memref<128x128xf32, #tpu.memory_space<vmem>>, vector<128x128xf32>
    %cst_13 = arith.constant dense<0.000000e+00> : vector<128x128xf32>
    %13 = tpu.matmul %11, %12, %cst_13 {dimension_numbers = #tpu.dot_dimension_numbers<[1], [0], [0], [1], [0, 0, 1, 1], [], []>} : vector<128x128xf32>, vector<128x128xf32>, vector<128x128xf32> -> vector<128x128xf32>
    %c0_14 = arith.constant 0 : index
    %c0_15 = arith.constant 0 : index
    %14 = vector.load %arg7[%c0_14, %c0_15] : memref<1x128xf32, #tpu.memory_space<vmem>>, vector<1x128xf32>
    %15 = vector.broadcast %14 : vector<1x128xf32> to vector<128x128xf32>
    %16 = arith.addf %13, %15 : vector<128x128xf32>
    %cst_16 = arith.constant 0.000000e+00 : f32
    %17 = vector.broadcast %cst_16 : f32 to vector<128x128xf32>
    %18 = arith.maximumf %16, %17 : vector<128x128xf32>
    %c0_17 = arith.constant 0 : index
    %c0_18 = arith.constant 0 : index
    %19 = vector.load %arg8[%c0_17, %c0_18] : memref<128x1xf32, #tpu.memory_space<vmem>>, vector<128x1xf32>
    %cst_19 = arith.constant dense<0.000000e+00> : vector<128x1xf32>
    %20 = tpu.matmul %18, %19, %cst_19 {dimension_numbers = #tpu.dot_dimension_numbers<[1], [0], [0], [1], [0, 0, 1, 1], [], []>} : vector<128x128xf32>, vector<128x1xf32>, vector<128x1xf32> -> vector<128x1xf32>
    %c0_20 = arith.constant 0 : index
    %c0_21 = arith.constant 0 : index
    %21 = memref.load %arg9[%c0_20, %c0_21] : memref<1x1xf32, #tpu.memory_space<smem>>
    %22 = vector.broadcast %21 : f32 to vector<128x1xf32>
    %23 = arith.addf %20, %22 : vector<128x1xf32>
    %c0_22 = arith.constant 0 : index
    %c0_23 = arith.constant 0 : index
    %24 = vector.load %arg10[%c0_22, %c0_23] : memref<128x1xf32, #tpu.memory_space<vmem>>, vector<128x1xf32>
    tpu.vector_store %arg10[%c0_22, %c0_23], %23 {strides = array<i32>} : memref<128x1xf32, #tpu.memory_space<vmem>>, vector<128x1xf32>,
    return
  }
  func.func @transform_0(%arg0: i32) -> (i32, i32) {
    %c0_i32 = arith.constant 0 : i32
    %c0_i32_0 = arith.constant 0 : i32
    return %arg0, %c0_i32 : i32, i32
  }
  func.func @transform_1(%arg0: i32) -> (i32, i32) {
    %c0_i32 = arith.constant 0 : i32
    %c0_i32_0 = arith.constant 0 : i32
    return %arg0, %c0_i32 : i32, i32
  }
  func.func @transform_2(%arg0: i32) -> (i32, i32) {
    %c0_i32 = arith.constant 0 : i32
    %c0_i32_0 = arith.constant 0 : i32
    %c0_i32_1 = arith.constant 0 : i32
    return %c0_i32, %c0_i32_0 : i32, i32
  }
  func.func @transform_3(%arg0: i32) -> (i32, i32) {
    %c0_i32 = arith.constant 0 : i32
    %c0_i32_0 = arith.constant 0 : i32
    %c0_i32_1 = arith.constant 0 : i32
    return %c0_i32, %c0_i32_0 : i32, i32
  }
  func.func @transform_4(%arg0: i32) -> (i32, i32) {
    %c0_i32 = arith.constant 0 : i32
    %c0_i32_0 = arith.constant 0 : i32
    %c0_i32_1 = arith.constant 0 : i32
    return %c0_i32, %c0_i32_0 : i32, i32
  }
  func.func @transform_5(%arg0: i32) -> (i32, i32) {
    %c0_i32 = arith.constant 0 : i32
    %c0_i32_0 = arith.constant 0 : i32
    %c0_i32_1 = arith.constant 0 : i32
    return %c0_i32, %c0_i32_0 : i32, i32
  }
  func.func @transform_6(%arg0: i32) -> (i32, i32) {
    %c0_i32 = arith.constant 0 : i32
    %c0_i32_0 = arith.constant 0 : i32
    %c0_i32_1 = arith.constant 0 : i32
    return %c0_i32, %c0_i32_0 : i32, i32
  }
  func.func @transform_7(%arg0: i32) -> (i32, i32) {
    %c0_i32 = arith.constant 0 : i32
    %c0_i32_0 = arith.constant 0 : i32
    %c0_i32_1 = arith.constant 0 : i32
    return %c0_i32, %c0_i32_0 : i32, i32
  }
  func.func @transform_8(%arg0: i32) -> (i32, i32) {
    %c0_i32 = arith.constant 0 : i32
    %c0_i32_0 = arith.constant 0 : i32
    %c0_i32_1 = arith.constant 0 : i32
    return %c0_i32, %c0_i32_0 : i32, i32
  }
  func.func @transform_9(%arg0: i32) -> (i32, i32) {
    %c0_i32 = arith.constant 0 : i32
    %c0_i32_0 = arith.constant 0 : i32
    return %arg0, %c0_i32 : i32, i32
  }
}

</mosaic_0001>

<llo_original>
// kernel: critic_forward.1
$region0: #{critic_forward.1}
  #allocation0 [shape = 'u32[]', space=smem, size = 0x4, offset = 0x4, fixed_abs, tag = 'smem constant byte address 0x4 - core index']
  #allocation1 [shape = 'u32[144,128]{1,0:T(1,128)}', space=vmem, size = 0x12000, scoped, tag = 'internal scratch']
  #allocation2 [shape = 'f32[1,1]{1,0:T(1,128)S(6)}', space=smem, size = 0x200, scoped, tag = 'scoped memory for critic_forward.1']
  %s0 = inlined_call_operand.vmem [shape: f32[128,12], index: 0, kind: input, shape index: {}]
  %s1 = inlined_call_operand.vmem [shape: f32[128,4], index: 1, kind: input, shape index: {}]
  %s2 = inlined_call_operand.vmem [shape: f32[12,128], index: 2, kind: input, shape index: {}]
  %s3 = inlined_call_operand.vmem [shape: f32[4,128], index: 3, kind: input, shape index: {}]
  %s4 = inlined_call_operand.vmem [shape: f32[1,128], index: 4, kind: input, shape index: {}]
  %s5 = inlined_call_operand.vmem [shape: f32[128,128], index: 5, kind: input, shape index: {}]
  %s6 = inlined_call_operand.vmem [shape: f32[1,128], index: 6, kind: input, shape index: {}]
  %s7 = inlined_call_operand.vmem [shape: f32[128,1], index: 7, kind: input, shape index: {}]
  %s8 = inlined_call_operand.<no memory space> [shape: f32[1,1], index: 8, kind: input, shape index: {}]
  %s9 = inlined_call_operand.vmem [shape: f32[128,1], index: 9, kind: output, shape index: {}]
  %s10 = sld [smem:[#allocation0]]
  $region46: #{critic_forward.1} parent=0
    _
  %s12 = ssub.s32 1, %s10
  %s13 = scalar_select 0, %s12, %s10
  %14 = sst [smem:[#allocation2]] %s8
  // Predicated region
  $region2: #{critic_forward.1} parent=0 // pred_check
    _
  $region3: #{critic_forward.1} parent=0 // pred_check_branch
    %16 = sbr.rel (0) target = $region5
  $region4: #{critic_forward.1} parent=0 // pred_region
    _
  $region5: #{critic_forward.1} parent=0 // pred_fallthru
    _
  // Predicated region
  $region6: #{critic_forward.1} parent=0 // pred_check
    _
  $region7: #{critic_forward.1} parent=0 // pred_check_branch
    %18 = sbr.rel (0) target = $region9
  $region8: #{critic_forward.1} parent=0 // pred_region
    _
  $region9: #{critic_forward.1} parent=0 // pred_fallthru
    _
  // Predicated region
  $region10: #{critic_forward.1} parent=0 // pred_check
    _
  $region11: #{critic_forward.1} parent=0 // pred_check_branch
    %20 = sbr.rel (0) target = $region13
  $region12: #{critic_forward.1} parent=0 // pred_region
    _
  $region13: #{critic_forward.1} parent=0 // pred_fallthru
    _
  // Predicated region
  $region14: #{critic_forward.1} parent=0 // pred_check
    _
  $region15: #{critic_forward.1} parent=0 // pred_check_branch
    %22 = sbr.rel (0) target = $region17
  $region16: #{critic_forward.1} parent=0 // pred_region
    _
  $region17: #{critic_forward.1} parent=0 // pred_fallthru
    _
  // Predicated region
  $region18: #{critic_forward.1} parent=0 // pred_check
    _
  $region19: #{critic_forward.1} parent=0 // pred_check_branch
    %24 = sbr.rel (0) target = $region21
  $region20: #{critic_forward.1} parent=0 // pred_region
    _
  $region21: #{critic_forward.1} parent=0 // pred_fallthru
    _
  // Predicated region
  $region22: #{critic_forward.1} parent=0 // pred_check
    _
  $region23: #{critic_forward.1} parent=0 // pred_check_branch
    %26 = sbr.rel (0) target = $region25
  $region24: #{critic_forward.1} parent=0 // pred_region
    _
  $region25: #{critic_forward.1} parent=0 // pred_fallthru
    _
  // Predicated region
  $region26: #{critic_forward.1} parent=0 // pred_check
    _
  $region27: #{critic_forward.1} parent=0 // pred_check_branch
    %28 = sbr.rel (0) target = $region29
  $region28: #{critic_forward.1} parent=0 // pred_region
    _
  $region29: #{critic_forward.1} parent=0 // pred_fallthru
    _
  // Predicated region
  $region30: #{critic_forward.1} parent=0 // pred_check
    _
  $region31: #{critic_forward.1} parent=0 // pred_check_branch
    %30 = sbr.rel (0) target = $region33
  $region32: #{critic_forward.1} parent=0 // pred_region
    _
  $region33: #{critic_forward.1} parent=0 // pred_fallthru
    _
  // Predicated region
  $region34: #{critic_forward.1} parent=0 // pred_check
    _
  $region35: #{critic_forward.1} parent=0 // pred_check_branch
    %32 = sbr.rel (0) target = $region37
  $region36: #{critic_forward.1} parent=0 // pred_region
    _
  $region37: #{critic_forward.1} parent=0 // pred_fallthru
    _
  %v33 = vld [vmem:[%s0] sm:$0xff]
  %v34 = vld [vmem:[%s0 + $0x8] sm:$0xff]
  %v35 = vld [vmem:[%s0 + $0x10] sm:$0xff]
  %v36 = vld [vmem:[%s0 + $0x18] sm:$0xff]
  %v37 = vld [vmem:[%s0 + $0x20] sm:$0xff]
  %v38 = vld [vmem:[%s0 + $0x28] sm:$0xff]
  %v39 = vld [vmem:[%s0 + $0x30] sm:$0xff]
  %v40 = vld [vmem:[%s0 + $0x38] sm:$0xff]
  %v41 = vld [vmem:[%s0 + $0x40] sm:$0xff]
  %v42 = vld [vmem:[%s0 + $0x48] sm:$0xff]
  %v43 = vld [vmem:[%s0 + $0x50] sm:$0xff]
  %v44 = vld [vmem:[%s0 + $0x58] sm:$0xff]
  %v45 = vld [vmem:[%s0 + $0x60] sm:$0xff]
  %v46 = vld [vmem:[%s0 + $0x68] sm:$0xff]
  %v47 = vld [vmem:[%s0 + $0x70] sm:$0xff]
  %v48 = vld [vmem:[%s0 + $0x78] sm:$0xff]
  %v49 = vld [vmem:[%s2] sm:$0xff]
  %v50 = vld [vmem:[%s2 + $0x8] sm:$0xf]
  %v51 = vld [vmem:[%s1] sm:$0xff]
  %v52 = vld [vmem:[%s1 + $0x8] sm:$0xff]
  %v53 = vld [vmem:[%s1 + $0x10] sm:$0xff]
  %v54 = vld [vmem:[%s1 + $0x18] sm:$0xff]
  %v55 = vld [vmem:[%s1 + $0x20] sm:$0xff]
  %v56 = vld [vmem:[%s1 + $0x28] sm:$0xff]
  %v57 = vld [vmem:[%s1 + $0x30] sm:$0xff]
  %v58 = vld [vmem:[%s1 + $0x38] sm:$0xff]
  %v59 = vld [vmem:[%s1 + $0x40] sm:$0xff]
  %v60 = vld [vmem:[%s1 + $0x48] sm:$0xff]
  %v61 = vld [vmem:[%s1 + $0x50] sm:$0xff]
  %v62 = vld [vmem:[%s1 + $0x58] sm:$0xff]
  %v63 = vld [vmem:[%s1 + $0x60] sm:$0xff]
  %v64 = vld [vmem:[%s1 + $0x68] sm:$0xff]
  %v65 = vld [vmem:[%s1 + $0x70] sm:$0xff]
  %v66 = vld [vmem:[%s1 + $0x78] sm:$0xff]
  %v67 = vld [vmem:[%s3] sm:$0xf]
  %vm68 = vcmask 31744
  %v70 = vsel %vm68, %v51, 0
  %v73 = vsel %vm68, %v52, 0
  %v76 = vsel %vm68, %v53, 0
  %v79 = vsel %vm68, %v54, 0
  %v82 = vsel %vm68, %v55, 0
  %v85 = vsel %vm68, %v56, 0
  %v88 = vsel %vm68, %v57, 0
  %v91 = vsel %vm68, %v58, 0
  %v94 = vsel %vm68, %v59, 0
  %v97 = vsel %vm68, %v60, 0
  %v100 = vsel %vm68, %v61, 0
  %v103 = vsel %vm68, %v62, 0
  %v106 = vsel %vm68, %v63, 0
  %v109 = vsel %vm68, %v64, 0
  %v112 = vsel %vm68, %v65, 0
  %v115 = vsel %vm68, %v66, 0
  %vm117 = vcmask 1043456
  %v119 = vsel %vm117, %v67, 0
  %121 = vmatprep.subr.mxu0 0.0
  %122 = vmatpush1.msra.mxu0 %v119
  %123 = vmatprep.subr.mxu0 0.0
  %124 = vmatpush1.msra.mxu0 0.0
  %125 = vmatprep.subr.mxu0 0.0
  %126 = vmatpush1.msra.mxu0 0.0
  %127 = vmatprep.subr.mxu0 0.0
  %128 = vmatpush1.msra.mxu0 0.0
  %129 = vmatprep.subr.mxu0 0.0
  %130 = vmatpush1.msra.mxu0 0.0
  %131 = vmatprep.subr.mxu0 0.0
  %132 = vmatpush1.msra.mxu0 0.0
  %133 = vmatprep.subr.mxu0 0.0
  %134 = vmatpush1.msra.mxu0 0.0
  %135 = vmatprep.subr.mxu0 0.0
  %136 = vmatpush1.msra.mxu0 0.0
  %137 = vmatprep.subr.mxu0 0.0
  %138 = vmatpush1.msra.mxu0 0.0
  %139 = vmatprep.subr.mxu0 0.0
  %140 = vmatpush1.msra.mxu0 0.0
  %141 = vmatprep.subr.mxu0 0.0
  %142 = vmatpush1.msra.mxu0 0.0
  %143 = vmatprep.subr.mxu0 0.0
  %144 = vmatpush1.msra.mxu0 0.0
  %145 = vmatprep.subr.mxu0 0.0
  %146 = vmatpush1.msra.mxu0 0.0
  %147 = vmatprep.subr.mxu0 0.0
  %148 = vmatpush1.msra.mxu0 0.0
  %149 = vmatprep.subr.mxu0 0.0
  %150 = vmatpush1.msra.mxu0 0.0
  %151 = vmatprep.subr.mxu0 0.0
  %152 = vmatpush1.msra.mxu0 0.0
  %153 = vmatprep.subr.mxu0 0.0
  %154 = vmatpush1.msra.mxu0 0.0
  %155 = vmatprep.subr.mxu0 0.0
  %156 = vmatpush1.msra.mxu0 0.0
  %157 = vmatprep.subr.mxu0 0.0
  %158 = vmatpush1.msra.mxu0 0.0
  %159 = vmatprep.subr.mxu0 0.0
  %160 = vmatpush1.msra.mxu0 0.0
  %161 = vmatprep.subr.mxu0 0.0
  %162 = vmatpush1.msra.mxu0 0.0
  %163 = vmatprep.subr.mxu0 0.0
  %164 = vmatpush1.msra.mxu0 0.0
  %165 = vmatprep.subr.mxu0 0.0
  %166 = vmatpush1.msra.mxu0 0.0
  %167 = vmatprep.subr.mxu0 0.0
  %168 = vmatpush1.msra.mxu0 0.0
  %169 = vmatprep.subr.mxu0 0.0
  %170 = vmatpush1.msra.mxu0 0.0
  %171 = vmatprep.subr.mxu0 0.0
  %172 = vmatpush1.msra.mxu0 0.0
  %173 = vmatprep.subr.mxu0 0.0
  %174 = vmatpush1.msra.mxu0 0.0
  %175 = vmatprep.subr.mxu0 0.0
  %176 = vmatpush1.msra.mxu0 0.0
  %177 = vmatprep.subr.mxu0 0.0
  %178 = vmatpush1.msra.mxu0 0.0
  %179 = vmatprep.subr.mxu0 0.0
  %180 = vmatpush1.msra.mxu0 0.0
  %181 = vmatprep.subr.mxu0 0.0
  %182 = vmatpush1.msra.mxu0 0.0
  %183 = vmatprep.subr.mxu0 0.0
  %184 = vmatpush1.msra.mxu0 0.0
  %185 = vmatprep.mubr.f32.mxu0 0.0
  %186 = vmatmul.mubr.f32.gmra.mrb[0].mxu0 %v70
  %v187 = vpop.f32.mrb[0].mxu0
  %v188 = vadd.f32 0.0, %v187
  %v189 = vpop.f32.mrb[0].mxu0
  %190 = vmatprep.mubr.f32.mxu0 0.0
  %191 = vmatmul.mubr.f32.gmra.mrb[0].mxu0 %v73
  %v192 = vpop.f32.mrb[0].mxu0
  %v193 = vadd.f32 0.0, %v192
  %v194 = vpop.f32.mrb[0].mxu0
  %195 = vmatprep.mubr.f32.mxu0 0.0
  %196 = vmatmul.mubr.f32.gmra.mrb[0].mxu0 %v76
  %v197 = vpop.f32.mrb[0].mxu0
  %v198 = vadd.f32 0.0, %v197
  %v199 = vpop.f32.mrb[0].mxu0
  %200 = vmatprep.mubr.f32.mxu0 0.0
  %201 = vmatmul.mubr.f32.gmra.mrb[0].mxu0 %v79
  %v202 = vpop.f32.mrb[0].mxu0
  %v203 = vadd.f32 0.0, %v202
  %v204 = vpop.f32.mrb[0].mxu0
  %205 = vmatprep.mubr.f32.mxu0 0.0
  %206 = vmatmul.mubr.f32.gmra.mrb[0].mxu0 %v82
  %v207 = vpop.f32.mrb[0].mxu0
  %v208 = vadd.f32 0.0, %v207
  %v209 = vpop.f32.mrb[0].mxu0
  %210 = vmatprep.mubr.f32.mxu0 0.0
  %211 = vmatmul.mubr.f32.gmra.mrb[0].mxu0 %v85
  %v212 = vpop.f32.mrb[0].mxu0
  %v213 = vadd.f32 0.0, %v212
  %v214 = vpop.f32.mrb[0].mxu0
  %215 = vmatprep.mubr.f32.mxu0 0.0
  %216 = vmatmul.mubr.f32.gmra.mrb[0].mxu0 %v88
  %v217 = vpop.f32.mrb[0].mxu0
  %v218 = vadd.f32 0.0, %v217
  %v219 = vpop.f32.mrb[0].mxu0
  %220 = vmatprep.mubr.f32.mxu0 0.0
  %221 = vmatmul.mubr.f32.gmra.mrb[0].mxu0 %v91
  %v222 = vpop.f32.mrb[0].mxu0
  %v223 = vadd.f32 0.0, %v222
  %v224 = vpop.f32.mrb[0].mxu0
  %225 = vmatprep.mubr.f32.mxu0 0.0
  %226 = vmatmul.mubr.f32.gmra.mrb[0].mxu0 %v94
  %v227 = vpop.f32.mrb[0].mxu0
  %v228 = vadd.f32 0.0, %v227
  %v229 = vpop.f32.mrb[0].mxu0
  %230 = vmatprep.mubr.f32.mxu0 0.0
  %231 = vmatmul.mubr.f32.gmra.mrb[0].mxu0 %v97
  %v232 = vpop.f32.mrb[0].mxu0
  %v233 = vadd.f32 0.0, %v232
  %v234 = vpop.f32.mrb[0].mxu0
  %235 = vmatprep.mubr.f32.mxu0 0.0
  %236 = vmatmul.mubr.f32.gmra.mrb[0].mxu0 %v100
  %v237 = vpop.f32.mrb[0].mxu0
  %v238 = vadd.f32 0.0, %v237
  %v239 = vpop.f32.mrb[0].mxu0
  %240 = vmatprep.mubr.f32.mxu0 0.0
  %241 = vmatmul.mubr.f32.gmra.mrb[0].mxu0 %v103
  %v242 = vpop.f32.mrb[0].mxu0
  %v243 = vadd.f32 0.0, %v242
  %v244 = vpop.f32.mrb[0].mxu0
  %245 = vmatprep.mubr.f32.mxu0 0.0
  %246 = vmatmul.mubr.f32.gmra.mrb[0].mxu0 %v106
  %v247 = vpop.f32.mrb[0].mxu0
  %v248 = vadd.f32 0.0, %v247
  %v249 = vpop.f32.mrb[0].mxu0
  %250 = vmatprep.mubr.f32.mxu0 0.0
  %251 = vmatmul.mubr.f32.gmra.mrb[0].mxu0 %v109
  %v252 = vpop.f32.mrb[0].mxu0
  %v253 = vadd.f32 0.0, %v252
  %v254 = vpop.f32.mrb[0].mxu0
  %255 = vmatprep.mubr.f32.mxu0 0.0
  %256 = vmatmul.mubr.f32.gmra.mrb[0].mxu0 %v112
  %v257 = vpop.f32.mrb[0].mxu0
  %v258 = vadd.f32 0.0, %v257
  %v259 = vpop.f32.mrb[0].mxu0
  %260 = vmatprep.mubr.f32.mxu0 0.0
  %261 = vmatmul.mubr.f32.gmra.mrb[0].mxu0 %v115
  %v262 = vpop.f32.mrb[0].mxu0
  %v263 = vadd.f32 0.0, %v262
  %v264 = vpop.f32.mrb[0].mxu0
  %265 = vdwg.mxu0
  %vm266 = vcmask 97280
  %v268 = vsel %vm266, %v33, 0
  %v271 = vsel %vm266, %v34, 0
  %v274 = vsel %vm266, %v35, 0
  %v277 = vsel %vm266, %v36, 0
  %v280 = vsel %vm266, %v37, 0
  %v283 = vsel %vm266, %v38, 0
  %v286 = vsel %vm266, %v39, 0
  %v289 = vsel %vm266, %v40, 0
  %v292 = vsel %vm266, %v41, 0
  %v295 = vsel %vm266, %v42, 0
  %v298 = vsel %vm266, %v43, 0
  %v301 = vsel %vm266, %v44, 0
  %v304 = vsel %vm266, %v45, 0
  %v307 = vsel %vm266, %v46, 0
  %v310 = vsel %vm266, %v47, 0
  %v313 = vsel %vm266, %v48, 0
  %v316 = vsel %vm117, %v50, 0
  %318 = vmatprep.subr.mxu0 0.0
  %319 = vmatpush1.msra.mxu0 %v49
  %320 = vmatprep.subr.mxu0 0.0
  %321 = vmatpush1.msra.mxu0 %v316
  %322 = vmatprep.subr.mxu0 0.0
  %323 = vmatpush1.msra.mxu0 0.0
  %324 = vmatprep.subr.mxu0 0.0
  %325 = vmatpush1.msra.mxu0 0.0
  %326 = vmatprep.subr.mxu0 0.0
  %327 = vmatpush1.msra.mxu0 0.0
  %328 = vmatprep.subr.mxu0 0.0
  %329 = vmatpush1.msra.mxu0 0.0
  %330 = vmatprep.subr.mxu0 0.0
  %331 = vmatpush1.msra.mxu0 0.0
  %332 = vmatprep.subr.mxu0 0.0
  %333 = vmatpush1.msra.mxu0 0.0
  %334 = vmatprep.subr.mxu0 0.0
  %335 = vmatpush1.msra.mxu0 0.0
  %336 = vmatprep.subr.mxu0 0.0
  %337 = vmatpush1.msra.mxu0 0.0
  %338 = vmatprep.subr.mxu0 0.0
  %339 = vmatpush1.msra.mxu0 0.0
  %340 = vmatprep.subr.mxu0 0.0
  %341 = vmatpush1.msra.mxu0 0.0
  %342 = vmatprep.subr.mxu0 0.0
  %343 = vmatpush1.msra.mxu0 0.0
  %344 = vmatprep.subr.mxu0 0.0
  %345 = vmatpush1.msra.mxu0 0.0
  %346 = vmatprep.subr.mxu0 0.0
  %347 = vmatpush1.msra.mxu0 0.0
  %348 = vmatprep.subr.mxu0 0.0
  %349 = vmatpush1.msra.mxu0 0.0
  %350 = vmatprep.subr.mxu0 0.0
  %351 = vmatpush1.msra.mxu0 0.0
  %352 = vmatprep.subr.mxu0 0.0
  %353 = vmatpush1.msra.mxu0 0.0
  %354 = vmatprep.subr.mxu0 0.0
  %355 = vmatpush1.msra.mxu0 0.0
  %356 = vmatprep.subr.mxu0 0.0
  %357 = vmatpush1.msra.mxu0 0.0
  %358 = vmatprep.subr.mxu0 0.0
  %359 = vmatpush1.msra.mxu0 0.0
  %360 = vmatprep.subr.mxu0 0.0
  %361 = vmatpush1.msra.mxu0 0.0
  %362 = vmatprep.subr.mxu0 0.0
  %363 = vmatpush1.msra.mxu0 0.0
  %364 = vmatprep.subr.mxu0 0.0
  %365 = vmatpush1.msra.mxu0 0.0
  %366 = vmatprep.subr.mxu0 0.0
  %367 = vmatpush1.msra.mxu0 0.0
  %368 = vmatprep.subr.mxu0 0.0
  %369 = vmatpush1.msra.mxu0 0.0
  %370 = vmatprep.subr.mxu0 0.0
  %371 = vmatpush1.msra.mxu0 0.0
  %372 = vmatprep.subr.mxu0 0.0
  %373 = vmatpush1.msra.mxu0 0.0
  %374 = vmatprep.subr.mxu0 0.0
  %375 = vmatpush1.msra.mxu0 0.0
  %376 = vmatprep.subr.mxu0 0.0
  %377 = vmatpush1.msra.mxu0 0.0
  %378 = vmatprep.subr.mxu0 0.0
  %379 = vmatpush1.msra.mxu0 0.0
  %380 = vmatprep.subr.mxu0 0.0
  %381 = vmatpush1.msra.mxu0 0.0
  %382 = vmatprep.mubr.f32.mxu0 0.0
  %383 = vmatmul.mubr.f32.gmra.mrb[0].mxu0 %v268
  %v384 = vpop.f32.mrb[0].mxu0
  %v385 = vadd.f32 %v188, %v384
  %v386 = vpop.f32.mrb[0].mxu0
  %387 = vmatprep.mubr.f32.mxu0 0.0
  %388 = vmatmul.mubr.f32.gmra.mrb[0].mxu0 %v271
  %v389 = vpop.f32.mrb[0].mxu0
  %v390 = vadd.f32 %v193, %v389
  %v391 = vpop.f32.mrb[0].mxu0
  %392 = vmatprep.mubr.f32.mxu0 0.0
  %393 = vmatmul.mubr.f32.gmra.mrb[0].mxu0 %v274
  %v394 = vpop.f32.mrb[0].mxu0
  %v395 = vadd.f32 %v198, %v394
  %v396 = vpop.f32.mrb[0].mxu0
  %397 = vmatprep.mubr.f32.mxu0 0.0
  %398 = vmatmul.mubr.f32.gmra.mrb[0].mxu0 %v277
  %v399 = vpop.f32.mrb[0].mxu0
  %v400 = vadd.f32 %v203, %v399
  %v401 = vpop.f32.mrb[0].mxu0
  %402 = vmatprep.mubr.f32.mxu0 0.0
  %403 = vmatmul.mubr.f32.gmra.mrb[0].mxu0 %v280
  %v404 = vpop.f32.mrb[0].mxu0
  %v405 = vadd.f32 %v208, %v404
  %v406 = vpop.f32.mrb[0].mxu0
  %407 = vmatprep.mubr.f32.mxu0 0.0
  %408 = vmatmul.mubr.f32.gmra.mrb[0].mxu0 %v283
  %v409 = vpop.f32.mrb[0].mxu0
  %v410 = vadd.f32 %v213, %v409
  %v411 = vpop.f32.mrb[0].mxu0
  %412 = vmatprep.mubr.f32.mxu0 0.0
  %413 = vmatmul.mubr.f32.gmra.mrb[0].mxu0 %v286
  %v414 = vpop.f32.mrb[0].mxu0
  %v415 = vadd.f32 %v218, %v414
  %v416 = vpop.f32.mrb[0].mxu0
  %417 = vmatprep.mubr.f32.mxu0 0.0
  %418 = vmatmul.mubr.f32.gmra.mrb[0].mxu0 %v289
  %v419 = vpop.f32.mrb[0].mxu0
  %v420 = vadd.f32 %v223, %v419
  %v421 = vpop.f32.mrb[0].mxu0
  %422 = vmatprep.mubr.f32.mxu0 0.0
  %423 = vmatmul.mubr.f32.gmra.mrb[0].mxu0 %v292
  %v424 = vpop.f32.mrb[0].mxu0
  %v425 = vadd.f32 %v228, %v424
  %v426 = vpop.f32.mrb[0].mxu0
  %427 = vmatprep.mubr.f32.mxu0 0.0
  %428 = vmatmul.mubr.f32.gmra.mrb[0].mxu0 %v295
  %v429 = vpop.f32.mrb[0].mxu0
  %v430 = vadd.f32 %v233, %v429
  %v431 = vpop.f32.mrb[0].mxu0
  %432 = vmatprep.mubr.f32.mxu0 0.0
  %433 = vmatmul.mubr.f32.gmra.mrb[0].mxu0 %v298
  %v434 = vpop.f32.mrb[0].mxu0
  %v435 = vadd.f32 %v238, %v434
  %v436 = vpop.f32.mrb[0].mxu0
  %437 = vmatprep.mubr.f32.mxu0 0.0
  %438 = vmatmul.mubr.f32.gmra.mrb[0].mxu0 %v301
  %v439 = vpop.f32.mrb[0].mxu0
  %v440 = vadd.f32 %v243, %v439
  %v441 = vpop.f32.mrb[0].mxu0
  %442 = vmatprep.mubr.f32.mxu0 0.0
  %443 = vmatmul.mubr.f32.gmra.mrb[0].mxu0 %v304
  %v444 = vpop.f32.mrb[0].mxu0
  %v445 = vadd.f32 %v248, %v444
  %v446 = vpop.f32.mrb[0].mxu0
  %447 = vmatprep.mubr.f32.mxu0 0.0
  %448 = vmatmul.mubr.f32.gmra.mrb[0].mxu0 %v307
  %v449 = vpop.f32.mrb[0].mxu0
  %v450 = vadd.f32 %v253, %v449
  %v451 = vpop.f32.mrb[0].mxu0
  %452 = vmatprep.mubr.f32.mxu0 0.0
  %453 = vmatmul.mubr.f32.gmra.mrb[0].mxu0 %v310
  %v454 = vpop.f32.mrb[0].mxu0
  %v455 = vadd.f32 %v258, %v454
  %v456 = vpop.f32.mrb[0].mxu0
  %457 = vmatprep.mubr.f32.mxu0 0.0
  %458 = vmatmul.mubr.f32.gmra.mrb[0].mxu0 %v313
  %v459 = vpop.f32.mrb[0].mxu0
  %v460 = vadd.f32 %v263, %v459
  %v461 = vpop.f32.mrb[0].mxu0
  %462 = vdwg.mxu0
  %v463 = vld [vmem:[%s4] sm:$0x1]
  %v465 = vlaneseq
  %v466 = vshrl.u32 %v465, 7
  %v467 = vsub.s32 0, %v466
  %v468 = vrot.slane %v463, %v467
  %v470 = vadd.f32 %v385, %v468
  %v471 = vadd.f32 %v390, %v468
  %v472 = vadd.f32 %v395, %v468
  %v473 = vadd.f32 %v400, %v468
  %v474 = vadd.f32 %v405, %v468
  %v475 = vadd.f32 %v410, %v468
  %v476 = vadd.f32 %v415, %v468
  %v477 = vadd.f32 %v420, %v468
  %v478 = vadd.f32 %v425, %v468
  %v479 = vadd.f32 %v430, %v468
  %v480 = vadd.f32 %v435, %v468
  %v481 = vadd.f32 %v440, %v468
  %v482 = vadd.f32 %v445, %v468
  %v483 = vadd.f32 %v450, %v468
  %v484 = vadd.f32 %v455, %v468
  %v485 = vadd.f32 %v460, %v468
  %v486 = vmax.f32 %v470, 0.0
  %v487 = vmax.f32 %v471, 0.0
  %v488 = vmax.f32 %v472, 0.0
  %v489 = vmax.f32 %v473, 0.0
  %v490 = vmax.f32 %v474, 0.0
  %v491 = vmax.f32 %v475, 0.0
  %v492 = vmax.f32 %v476, 0.0
  %v493 = vmax.f32 %v477, 0.0
  %v494 = vmax.f32 %v478, 0.0
  %v495 = vmax.f32 %v479, 0.0
  %v496 = vmax.f32 %v480, 0.0
  %v497 = vmax.f32 %v481, 0.0
  %v498 = vmax.f32 %v482, 0.0
  %v499 = vmax.f32 %v483, 0.0
  %v500 = vmax.f32 %v484, 0.0
  %v501 = vmax.f32 %v485, 0.0
  %v502 = vld [vmem:[%s5] sm:$0xff]
  %v503 = vld [vmem:[%s5 + $0x8] sm:$0xff]
  %v504 = vld [vmem:[%s5 + $0x10] sm:$0xff]
  %v505 = vld [vmem:[%s5 + $0x18] sm:$0xff]
  %v506 = vld [vmem:[%s5 + $0x20] sm:$0xff]
  %v507 = vld [vmem:[%s5 + $0x28] sm:$0xff]
  %v508 = vld [vmem:[%s5 + $0x30] sm:$0xff]
  %v509 = vld [vmem:[%s5 + $0x38] sm:$0xff]
  %v510 = vld [vmem:[%s5 + $0x40] sm:$0xff]
  %v511 = vld [vmem:[%s5 + $0x48] sm:$0xff]
  %v512 = vld [vmem:[%s5 + $0x50] sm:$0xff]
  %v513 = vld [vmem:[%s5 + $0x58] sm:$0xff]
  %v514 = vld [vmem:[%s5 + $0x60] sm:$0xff]
  %v515 = vld [vmem:[%s5 + $0x68] sm:$0xff]
  %v516 = vld [vmem:[%s5 + $0x70] sm:$0xff]
  %v517 = vld [vmem:[%s5 + $0x78] sm:$0xff]
  %v518 = vld [vmem:[%s6] sm:$0x1]
  %v520 = vlaneseq
  %v521 = vshrl.u32 %v520, 7
  %v522 = vsub.s32 0, %v521
  %v523 = vrot.slane %v518, %v522
  %525 = vmatprep.subr.mxu0 0.0
  %526 = vmatpush1.msra.mxu0 %v502
  %527 = vmatprep.subr.mxu0 0.0
  %528 = vmatpush1.msra.mxu0 %v503
  %529 = vmatprep.subr.mxu0 0.0
  %530 = vmatpush1.msra.mxu0 %v504
  %531 = vmatprep.subr.mxu0 0.0
  %532 = vmatpush1.msra.mxu0 %v505
  %533 = vmatprep.subr.mxu0 0.0
  %534 = vmatpush1.msra.mxu0 %v506
  %535 = vmatprep.subr.mxu0 0.0
  %536 = vmatpush1.msra.mxu0 %v507
  %537 = vmatprep.subr.mxu0 0.0
  %538 = vmatpush1.msra.mxu0 %v508
  %539 = vmatprep.subr.mxu0 0.0
  %540 = vmatpush1.msra.mxu0 %v509
  %541 = vmatprep.subr.mxu0 0.0
  %542 = vmatpush1.msra.mxu0 %v510
  %543 = vmatprep.subr.mxu0 0.0
  %544 = vmatpush1.msra.mxu0 %v511
  %545 = vmatprep.subr.mxu0 0.0
  %546 = vmatpush1.msra.mxu0 %v512
  %547 = vmatprep.subr.mxu0 0.0
  %548 = vmatpush1.msra.mxu0 %v513
  %549 = vmatprep.subr.mxu0 0.0
  %550 = vmatpush1.msra.mxu0 %v514
  %551 = vmatprep.subr.mxu0 0.0
  %552 = vmatpush1.msra.mxu0 %v515
  %553 = vmatprep.subr.mxu0 0.0
  %554 = vmatpush1.msra.mxu0 %v516
  %555 = vmatprep.subr.mxu0 0.0
  %556 = vmatpush1.msra.mxu0 %v517
  %557 = vmatprep.subr.mxu0 0.0
  %558 = vmatpush1.msra.mxu0 0.0
  %559 = vmatprep.subr.mxu0 0.0
  %560 = vmatpush1.msra.mxu0 0.0
  %561 = vmatprep.subr.mxu0 0.0
  %562 = vmatpush1.msra.mxu0 0.0
  %563 = vmatprep.subr.mxu0 0.0
  %564 = vmatpush1.msra.mxu0 0.0
  %565 = vmatprep.subr.mxu0 0.0
  %566 = vmatpush1.msra.mxu0 0.0
  %567 = vmatprep.subr.mxu0 0.0
  %568 = vmatpush1.msra.mxu0 0.0
  %569 = vmatprep.subr.mxu0 0.0
  %570 = vmatpush1.msra.mxu0 0.0
  %571 = vmatprep.subr.mxu0 0.0
  %572 = vmatpush1.msra.mxu0 0.0
  %573 = vmatprep.subr.mxu0 0.0
  %574 = vmatpush1.msra.mxu0 0.0
  %575 = vmatprep.subr.mxu0 0.0
  %576 = vmatpush1.msra.mxu0 0.0
  %577 = vmatprep.subr.mxu0 0.0
  %578 = vmatpush1.msra.mxu0 0.0
  %579 = vmatprep.subr.mxu0 0.0
  %580 = vmatpush1.msra.mxu0 0.0
  %581 = vmatprep.subr.mxu0 0.0
  %582 = vmatpush1.msra.mxu0 0.0
  %583 = vmatprep.subr.mxu0 0.0
  %584 = vmatpush1.msra.mxu0 0.0
  %585 = vmatprep.subr.mxu0 0.0
  %586 = vmatpush1.msra.mxu0 0.0
  %587 = vmatprep.subr.mxu0 0.0
  %588 = vmatpush1.msra.mxu0 0.0
  %589 = vmatprep.mubr.f32.mxu0 0.0
  %590 = vmatmul.mubr.f32.gmra.mrb[0].mxu0 %v486
  %v591 = vpop.f32.mrb[0].mxu0
  %v592 = vadd.f32 %v523, %v591
  %v593 = vpop.f32.mrb[0].mxu0
  %594 = vmatprep.mubr.f32.mxu0 0.0
  %595 = vmatmul.mubr.f32.gmra.mrb[0].mxu0 %v487
  %v596 = vpop.f32.mrb[0].mxu0
  %v597 = vadd.f32 %v523, %v596
  %v598 = vpop.f32.mrb[0].mxu0
  %599 = vmatprep.mubr.f32.mxu0 0.0
  %600 = vmatmul.mubr.f32.gmra.mrb[0].mxu0 %v488
  %v601 = vpop.f32.mrb[0].mxu0
  %v602 = vadd.f32 %v523, %v601
  %v603 = vpop.f32.mrb[0].mxu0
  %604 = vmatprep.mubr.f32.mxu0 0.0
  %605 = vmatmul.mubr.f32.gmra.mrb[0].mxu0 %v489
  %v606 = vpop.f32.mrb[0].mxu0
  %v607 = vadd.f32 %v523, %v606
  %v608 = vpop.f32.mrb[0].mxu0
  %609 = vmatprep.mubr.f32.mxu0 0.0
  %610 = vmatmul.mubr.f32.gmra.mrb[0].mxu0 %v490
  %v611 = vpop.f32.mrb[0].mxu0
  %v612 = vadd.f32 %v523, %v611
  %v613 = vpop.f32.mrb[0].mxu0
  %614 = vmatprep.mubr.f32.mxu0 0.0
  %615 = vmatmul.mubr.f32.gmra.mrb[0].mxu0 %v491
  %v616 = vpop.f32.mrb[0].mxu0
  %v617 = vadd.f32 %v523, %v616
  %v618 = vpop.f32.mrb[0].mxu0
  %619 = vmatprep.mubr.f32.mxu0 0.0
  %620 = vmatmul.mubr.f32.gmra.mrb[0].mxu0 %v492
  %v621 = vpop.f32.mrb[0].mxu0
  %v622 = vadd.f32 %v523, %v621
  %v623 = vpop.f32.mrb[0].mxu0
  %624 = vmatprep.mubr.f32.mxu0 0.0
  %625 = vmatmul.mubr.f32.gmra.mrb[0].mxu0 %v493
  %v626 = vpop.f32.mrb[0].mxu0
  %v627 = vadd.f32 %v523, %v626
  %v628 = vpop.f32.mrb[0].mxu0
  %629 = vmatprep.mubr.f32.mxu0 0.0
  %630 = vmatmul.mubr.f32.gmra.mrb[0].mxu0 %v494
  %v631 = vpop.f32.mrb[0].mxu0
  %v632 = vadd.f32 %v523, %v631
  %v633 = vpop.f32.mrb[0].mxu0
  %634 = vmatprep.mubr.f32.mxu0 0.0
  %635 = vmatmul.mubr.f32.gmra.mrb[0].mxu0 %v495
  %v636 = vpop.f32.mrb[0].mxu0
  %v637 = vadd.f32 %v523, %v636
  %v638 = vpop.f32.mrb[0].mxu0
  %639 = vmatprep.mubr.f32.mxu0 0.0
  %640 = vmatmul.mubr.f32.gmra.mrb[0].mxu0 %v496
  %v641 = vpop.f32.mrb[0].mxu0
  %v642 = vadd.f32 %v523, %v641
  %v643 = vpop.f32.mrb[0].mxu0
  %644 = vmatprep.mubr.f32.mxu0 0.0
  %645 = vmatmul.mubr.f32.gmra.mrb[0].mxu0 %v497
  %v646 = vpop.f32.mrb[0].mxu0
  %v647 = vadd.f32 %v523, %v646
  %v648 = vpop.f32.mrb[0].mxu0
  %649 = vmatprep.mubr.f32.mxu0 0.0
  %650 = vmatmul.mubr.f32.gmra.mrb[0].mxu0 %v498
  %v651 = vpop.f32.mrb[0].mxu0
  %v652 = vadd.f32 %v523, %v651
  %v653 = vpop.f32.mrb[0].mxu0
  %654 = vmatprep.mubr.f32.mxu0 0.0
  %655 = vmatmul.mubr.f32.gmra.mrb[0].mxu0 %v499
  %v656 = vpop.f32.mrb[0].mxu0
  %v657 = vadd.f32 %v523, %v656
  %v658 = vpop.f32.mrb[0].mxu0
  %659 = vmatprep.mubr.f32.mxu0 0.0
  %660 = vmatmul.mubr.f32.gmra.mrb[0].mxu0 %v500
  %v661 = vpop.f32.mrb[0].mxu0
  %v662 = vadd.f32 %v523, %v661
  %v663 = vpop.f32.mrb[0].mxu0
  %664 = vmatprep.mubr.f32.mxu0 0.0
  %665 = vmatmul.mubr.f32.gmra.mrb[0].mxu0 %v501
  %v666 = vpop.f32.mrb[0].mxu0
  %v667 = vadd.f32 %v523, %v666
  %v668 = vpop.f32.mrb[0].mxu0
  %669 = vdwg.mxu0
  %v670 = vmax.f32 %v592, 0.0
  %v671 = vmax.f32 %v597, 0.0
  %v672 = vmax.f32 %v602, 0.0
  %v673 = vmax.f32 %v607, 0.0
  %v674 = vmax.f32 %v612, 0.0
  %v675 = vmax.f32 %v617, 0.0
  %v676 = vmax.f32 %v622, 0.0
  %v677 = vmax.f32 %v627, 0.0
  %v678 = vmax.f32 %v632, 0.0
  %v679 = vmax.f32 %v637, 0.0
  %v680 = vmax.f32 %v642, 0.0
  %v681 = vmax.f32 %v647, 0.0
  %v682 = vmax.f32 %v652, 0.0
  %v683 = vmax.f32 %v657, 0.0
  %v684 = vmax.f32 %v662, 0.0
  %v685 = vmax.f32 %v667, 0.0
  %v686 = vld [vmem:[%s7] sm:$0xff]
  %v687 = vld [vmem:[%s7 + $0x8] sm:$0xff]
  %v688 = vld [vmem:[%s7 + $0x10] sm:$0xff]
  %v689 = vld [vmem:[%s7 + $0x18] sm:$0xff]
  %v690 = vld [vmem:[%s7 + $0x20] sm:$0xff]
  %v691 = vld [vmem:[%s7 + $0x28] sm:$0xff]
  %v692 = vld [vmem:[%s7 + $0x30] sm:$0xff]
  %v693 = vld [vmem:[%s7 + $0x38] sm:$0xff]
  %v694 = vld [vmem:[%s7 + $0x40] sm:$0xff]
  %v695 = vld [vmem:[%s7 + $0x48] sm:$0xff]
  %v696 = vld [vmem:[%s7 + $0x50] sm:$0xff]
  %v697 = vld [vmem:[%s7 + $0x58] sm:$0xff]
  %v698 = vld [vmem:[%s7 + $0x60] sm:$0xff]
  %v699 = vld [vmem:[%s7 + $0x68] sm:$0xff]
  %v700 = vld [vmem:[%s7 + $0x70] sm:$0xff]
  %v701 = vld [vmem:[%s7 + $0x78] sm:$0xff]
  %s702 = sld [smem:[#allocation2]]
  %v703 = vstv %s702
  %704 = vmatprep.subr.mxu0 0.0
  %705 = vmatpush1.msra.mxu0 %v686
  %706 = vmatprep.subr.mxu0 0.0
  %707 = vmatpush1.msra.mxu0 %v687
  %708 = vmatprep.subr.mxu0 0.0
  %709 = vmatpush1.msra.mxu0 %v688
  %710 = vmatprep.subr.mxu0 0.0
  %711 = vmatpush1.msra.mxu0 %v689
  %712 = vmatprep.subr.mxu0 0.0
  %713 = vmatpush1.msra.mxu0 %v690
  %714 = vmatprep.subr.mxu0 0.0
  %715 = vmatpush1.msra.mxu0 %v691
  %716 = vmatprep.subr.mxu0 0.0
  %717 = vmatpush1.msra.mxu0 %v692
  %718 = vmatprep.subr.mxu0 0.0
  %719 = vmatpush1.msra.mxu0 %v693
  %720 = vmatprep.subr.mxu0 0.0
  %721 = vmatpush1.msra.mxu0 %v694
  %722 = vmatprep.subr.mxu0 0.0
  %723 = vmatpush1.msra.mxu0 %v695
  %724 = vmatprep.subr.mxu0 0.0
  %725 = vmatpush1.msra.mxu0 %v696
  %726 = vmatprep.subr.mxu0 0.0
  %727 = vmatpush1.msra.mxu0 %v697
  %728 = vmatprep.subr.mxu0 0.0
  %729 = vmatpush1.msra.mxu0 %v698
  %730 = vmatprep.subr.mxu0 0.0
  %731 = vmatpush1.msra.mxu0 %v699
  %732 = vmatprep.subr.mxu0 0.0
  %733 = vmatpush1.msra.mxu0 %v700
  %734 = vmatprep.subr.mxu0 0.0
  %735 = vmatpush1.msra.mxu0 %v701
  %736 = vmatprep.subr.mxu0 0.0
  %737 = vmatpush1.msra.mxu0 0.0
  %738 = vmatprep.subr.mxu0 0.0
  %739 = vmatpush1.msra.mxu0 0.0
  %740 = vmatprep.subr.mxu0 0.0
  %741 = vmatpush1.msra.mxu0 0.0
  %742 = vmatprep.subr.mxu0 0.0
  %743 = vmatpush1.msra.mxu0 0.0
  %744 = vmatprep.subr.mxu0 0.0
  %745 = vmatpush1.msra.mxu0 0.0
  %746 = vmatprep.subr.mxu0 0.0
  %747 = vmatpush1.msra.mxu0 0.0
  %748 = vmatprep.subr.mxu0 0.0
  %749 = vmatpush1.msra.mxu0 0.0
  %750 = vmatprep.subr.mxu0 0.0
  %751 = vmatpush1.msra.mxu0 0.0
  %752 = vmatprep.subr.mxu0 0.0
  %753 = vmatpush1.msra.mxu0 0.0
  %754 = vmatprep.subr.mxu0 0.0
  %755 = vmatpush1.msra.mxu0 0.0
  %756 = vmatprep.subr.mxu0 0.0
  %757 = vmatpush1.msra.mxu0 0.0
  %758 = vmatprep.subr.mxu0 0.0
  %759 = vmatpush1.msra.mxu0 0.0
  %760 = vmatprep.subr.mxu0 0.0
  %761 = vmatpush1.msra.mxu0 0.0
  %762 = vmatprep.subr.mxu0 0.0
  %763 = vmatpush1.msra.mxu0 0.0
  %764 = vmatprep.subr.mxu0 0.0
  %765 = vmatpush1.msra.mxu0 0.0
  %766 = vmatprep.subr.mxu0 0.0
  %767 = vmatpush1.msra.mxu0 0.0
  %768 = vmatprep.mubr.f32.mxu0 0.0
  %769 = vmatmul.mubr.f32.gmra.mrb[0].mxu0 %v670
  %v770 = vpop.f32.mrb[0].mxu0
  %v771 = vadd.f32 %v703, %v770
  %v772 = vpop.f32.mrb[0].mxu0
  %773 = vmatprep.mubr.f32.mxu0 0.0
  %774 = vmatmul.mubr.f32.gmra.mrb[0].mxu0 %v671
  %v775 = vpop.f32.mrb[0].mxu0
  %v776 = vadd.f32 %v703, %v775
  %v777 = vpop.f32.mrb[0].mxu0
  %778 = vmatprep.mubr.f32.mxu0 0.0
  %779 = vmatmul.mubr.f32.gmra.mrb[0].mxu0 %v672
  %v780 = vpop.f32.mrb[0].mxu0
  %v781 = vadd.f32 %v703, %v780
  %v782 = vpop.f32.mrb[0].mxu0
  %783 = vmatprep.mubr.f32.mxu0 0.0
  %784 = vmatmul.mubr.f32.gmra.mrb[0].mxu0 %v673
  %v785 = vpop.f32.mrb[0].mxu0
  %v786 = vadd.f32 %v703, %v785
  %v787 = vpop.f32.mrb[0].mxu0
  %788 = vmatprep.mubr.f32.mxu0 0.0
  %789 = vmatmul.mubr.f32.gmra.mrb[0].mxu0 %v674
  %v790 = vpop.f32.mrb[0].mxu0
  %v791 = vadd.f32 %v703, %v790
  %v792 = vpop.f32.mrb[0].mxu0
  %793 = vmatprep.mubr.f32.mxu0 0.0
  %794 = vmatmul.mubr.f32.gmra.mrb[0].mxu0 %v675
  %v795 = vpop.f32.mrb[0].mxu0
  %v796 = vadd.f32 %v703, %v795
  %v797 = vpop.f32.mrb[0].mxu0
  %798 = vmatprep.mubr.f32.mxu0 0.0
  %799 = vmatmul.mubr.f32.gmra.mrb[0].mxu0 %v676
  %v800 = vpop.f32.mrb[0].mxu0
  %v801 = vadd.f32 %v703, %v800
  %v802 = vpop.f32.mrb[0].mxu0
  %803 = vmatprep.mubr.f32.mxu0 0.0
  %804 = vmatmul.mubr.f32.gmra.mrb[0].mxu0 %v677
  %v805 = vpop.f32.mrb[0].mxu0
  %v806 = vadd.f32 %v703, %v805
  %v807 = vpop.f32.mrb[0].mxu0
  %808 = vmatprep.mubr.f32.mxu0 0.0
  %809 = vmatmul.mubr.f32.gmra.mrb[0].mxu0 %v678
  %v810 = vpop.f32.mrb[0].mxu0
  %v811 = vadd.f32 %v703, %v810
  %v812 = vpop.f32.mrb[0].mxu0
  %813 = vmatprep.mubr.f32.mxu0 0.0
  %814 = vmatmul.mubr.f32.gmra.mrb[0].mxu0 %v679
  %v815 = vpop.f32.mrb[0].mxu0
  %v816 = vadd.f32 %v703, %v815
  %v817 = vpop.f32.mrb[0].mxu0
  %818 = vmatprep.mubr.f32.mxu0 0.0
  %819 = vmatmul.mubr.f32.gmra.mrb[0].mxu0 %v680
  %v820 = vpop.f32.mrb[0].mxu0
  %v821 = vadd.f32 %v703, %v820
  %v822 = vpop.f32.mrb[0].mxu0
  %823 = vmatprep.mubr.f32.mxu0 0.0
  %824 = vmatmul.mubr.f32.gmra.mrb[0].mxu0 %v681
  %v825 = vpop.f32.mrb[0].mxu0
  %v826 = vadd.f32 %v703, %v825
  %v827 = vpop.f32.mrb[0].mxu0
  %828 = vmatprep.mubr.f32.mxu0 0.0
  %829 = vmatmul.mubr.f32.gmra.mrb[0].mxu0 %v682
  %v830 = vpop.f32.mrb[0].mxu0
  %v831 = vadd.f32 %v703, %v830
  %v832 = vpop.f32.mrb[0].mxu0
  %833 = vmatprep.mubr.f32.mxu0 0.0
  %834 = vmatmul.mubr.f32.gmra.mrb[0].mxu0 %v683
  %v835 = vpop.f32.mrb[0].mxu0
  %v836 = vadd.f32 %v703, %v835
  %v837 = vpop.f32.mrb[0].mxu0
  %838 = vmatprep.mubr.f32.mxu0 0.0
  %839 = vmatmul.mubr.f32.gmra.mrb[0].mxu0 %v684
  %v840 = vpop.f32.mrb[0].mxu0
  %v841 = vadd.f32 %v703, %v840
  %v842 = vpop.f32.mrb[0].mxu0
  %843 = vmatprep.mubr.f32.mxu0 0.0
  %844 = vmatmul.mubr.f32.gmra.mrb[0].mxu0 %v685
  %v845 = vpop.f32.mrb[0].mxu0
  %v846 = vadd.f32 %v703, %v845
  %v847 = vpop.f32.mrb[0].mxu0
  %848 = vdwg.mxu0
  %vm849 = vcmask 7168
  %850 = vst.msk [vmem:[%s9] sm:$0xff] %vm849, %v771
  %851 = vst.msk [vmem:[%s9 + $0x8] sm:$0xff] %vm849, %v776
  %852 = vst.msk [vmem:[%s9 + $0x10] sm:$0xff] %vm849, %v781
  %853 = vst.msk [vmem:[%s9 + $0x18] sm:$0xff] %vm849, %v786
  %854 = vst.msk [vmem:[%s9 + $0x20] sm:$0xff] %vm849, %v791
  %855 = vst.msk [vmem:[%s9 + $0x28] sm:$0xff] %vm849, %v796
  %856 = vst.msk [vmem:[%s9 + $0x30] sm:$0xff] %vm849, %v801
  %857 = vst.msk [vmem:[%s9 + $0x38] sm:$0xff] %vm849, %v806
  %858 = vst.msk [vmem:[%s9 + $0x40] sm:$0xff] %vm849, %v811
  %859 = vst.msk [vmem:[%s9 + $0x48] sm:$0xff] %vm849, %v816
  %860 = vst.msk [vmem:[%s9 + $0x50] sm:$0xff] %vm849, %v821
  %861 = vst.msk [vmem:[%s9 + $0x58] sm:$0xff] %vm849, %v826
  %862 = vst.msk [vmem:[%s9 + $0x60] sm:$0xff] %vm849, %v831
  %863 = vst.msk [vmem:[%s9 + $0x68] sm:$0xff] %vm849, %v836
  %864 = vst.msk [vmem:[%s9 + $0x70] sm:$0xff] %vm849, %v841
  %865 = vst.msk [vmem:[%s9 + $0x78] sm:$0xff] %vm849, %v846
  // Predicated region
  $region38: #{critic_forward.1} parent=0 // pred_check
    _
  $region39: #{critic_forward.1} parent=0 // pred_check_branch
    %867 = sbr.rel (0) target = $region41
  $region40: #{critic_forward.1} parent=0 // pred_region
    _
  $region41: #{critic_forward.1} parent=0 // pred_fallthru
    _
  // Predicated region
  $region42: #{critic_forward.1} parent=0 // pred_check
    _
  $region43: #{critic_forward.1} parent=0 // pred_check_branch
    %869 = sbr.rel (0) target = $region45
  $region44: #{critic_forward.1} parent=0 // pred_region
    _
  $region45: #{critic_forward.1} parent=0 // pred_fallthru
    _

</llo_original>
